<compile_context>
chip_gen: v7x
topology: tpu7x:2x2x1
jax: 0.10.0
libtpu: 0.0.40
codegen_flags: <defaults>
</compile_context>

<pallas_src>
import functools

import jax
import jax.numpy as jnp
from jax.experimental import pallas as pl
from jax.experimental.pallas import tpu as pltpu

_LANES = 128
_SUBLANES = 8


def _round_up(x, m):
    return -(-x // m) * m


# ---------------------------------------------------------------------------
# Fused Pallas kernel: GF layers + flatten + MLP readout, all VMEM-resident.
# ---------------------------------------------------------------------------
def _gcnn_gf_fused_kernel(x_ref, p_ref, out_ref, *,
                          T, N, K, f_dims, fc_dims,
                          off_spow, off_wk, off_bg, off_fcw, off_fcb):
    """x_ref : [F0*T, N]  channel-major input slab, row = f*T + t
       p_ref : [R, Lw]    packed parameter slab (static row offsets below)
       out_ref: [T, M_last]
    """
    n_gf = len(f_dims) - 1
    n_fc = len(fc_dims) - 1

    # ---- graph-filter layers (channel-major, fully batch-collapsed) --------
    z = x_ref[...]                                            # [F0*T, N]
    f_in = f_dims[0]
    for l in range(n_gf):
        f_out = f_dims[l + 1]

        # K taps: tap_k = Z @ (S^T)^k.  The transposed S powers are
        # precomputed wrapper-side, so the K-1 matmuls are independent
        # (no serial MXU dependency chain).
        taps = [z]
        for k in range(1, K):
            sp = p_ref[off_spow + (k - 1) * N:off_spow + k * N, 0:N]   # [N,N]
            taps.append(jnp.dot(z, sp, preferred_element_type=jnp.float32))
        zcat = jnp.concatenate(taps, axis=0)                  # [K*Fin*T, N]

        # One MXU pass merges all K taps and both samples:
        #   Wkron = kron(Wcat^T, I_T)  (block-diagonal over the static batch).
        rw = f_out * T
        cw = K * f_in * T
        wk = p_ref[off_wk[l]:off_wk[l] + rw, 0:cw]            # [Fout*T, K*Fin*T]
        bb = p_ref[off_bg[l]:off_bg[l] + rw, 0:N]             # [Fout*T, N]
        y = jnp.dot(wk, zcat, preferred_element_type=jnp.float32) + bb
        z = jnp.maximum(y, 0.0)                               # [Fout*T, N]
        f_in = f_out

    # ---- feature-major flatten folded into the first FC contraction --------
    #   h[t, m] = sum_{f, n} z[f*T + t, n] * W1[f*N + n, m]
    # computed as F_last accumulated [T, N] x [N, M0] matmuls — no in-kernel
    # lane concatenation / relayout for the flatten.
    f_last = f_in
    m0 = fc_dims[1]
    h = None
    for f in range(f_last):
        z_f = z[f * T:(f + 1) * T, :]                         # [T, N]
        w_f = p_ref[off_fcw[0] + f * N:off_fcw[0] + (f + 1) * N, 0:m0]
        term = jnp.dot(z_f, w_f, preferred_element_type=jnp.float32)
        h = term if h is None else h + term
    h = h + p_ref[off_fcb[0]:off_fcb[0] + 1, 0:m0]            # [T, M0]

    # ---- remaining FC layers (ReLU between linears only, as in FCL) --------
    for i in range(1, n_fc):
        din, dout = fc_dims[i], fc_dims[i + 1]
        w = p_ref[off_fcw[i]:off_fcw[i] + din, 0:dout]
        b = p_ref[off_fcb[i]:off_fcb[i] + 1, 0:dout]
        h = jnp.maximum(h, 0.0)
        h = jnp.dot(h, w, preferred_element_type=jnp.float32) + b

    out_ref[...] = h.astype(out_ref.dtype)


# ---------------------------------------------------------------------------
# Wrapper: pack operands into two slabs, run one pallas_call (no grid).
# ---------------------------------------------------------------------------
def gcnn_gf_forward(x_tfn, S, gf_params, fc_params):
    """x_tfn: [T, F0, N] (PyTorch channel-first) or [T, N] when F0 == 1."""
    if x_tfn.ndim == 2:                       # mirrors the unsqueeze(1) path
        x_tfn = x_tfn[:, None, :]
    x_tfn = x_tfn.astype(jnp.float32)
    T, F0, N = x_tfn.shape
    K = gf_params[0][0].shape[0]
    f_dims = [F0] + [W.shape[2] for (W, _) in gf_params]
    f_last = f_dims[-1]

    # ---- wrapper-side operand preprocessing (layout plumbing only) ---------
    # Input as a channel-major [F0*T, N] slab: row = f*T + t.
    x_slab = jnp.transpose(x_tfn, (1, 0, 2)).reshape(F0 * T, N)

    raw_pieces = []
    _cur = [0]

    def _add(a):
        a = jnp.asarray(a, jnp.float32)
        off = _cur[0]
        raw_pieces.append(a)
        _cur[0] += _round_up(a.shape[0], _SUBLANES)
        return off

    # (S^T)^k for k = 1..K-1, stacked (breaks the serial S-power chain).
    St = jnp.asarray(S, jnp.float32).T
    spow, acc = [], St
    for _ in range(1, K):
        spow.append(acc)
        acc = acc @ St
    off_spow = _add(jnp.concatenate(spow, axis=0)) if spow else 0

    # Graph-filter layers: Wkron_l = kron(Wcat_l^T, I_T); bias pre-broadcast.
    eye_t = jnp.eye(T, dtype=jnp.float32)
    off_wk, off_bg = [], []
    for (W, b) in gf_params:
        Kl, Fin, Fout = W.shape
        wcat_t = jnp.transpose(jnp.asarray(W, jnp.float32),
                               (2, 0, 1)).reshape(Fout, Kl * Fin)
        off_wk.append(_add(jnp.kron(wcat_t, eye_t)))          # [Fout*T, K*Fin*T]
        b_bc = jnp.broadcast_to(
            jnp.repeat(jnp.asarray(b, jnp.float32), T)[:, None], (Fout * T, N))
        off_bg.append(_add(b_bc))

    # FC layers; an empty MLP degenerates to an identity "linear" so the
    # flatten-fold path stays uniform (exactly the raw flatten in that case).
    fc = [(jnp.asarray(W, jnp.float32), jnp.asarray(b, jnp.float32))
          for (W, b) in fc_params]
    if not fc:
        d = N * f_last
        fc = [(jnp.eye(d, dtype=jnp.float32), jnp.zeros((d,), jnp.float32))]
    fc_dims = [N * f_last] + [W.shape[1] for (W, _) in fc]
    off_fcw, off_fcb = [], []
    for (W, b) in fc:
        off_fcw.append(_add(W))                               # [Din, Dout]
        off_fcb.append(_add(b.reshape(1, -1)))                # [1, Dout]

    # Pad every piece to a common 128-multiple lane width and an 8-row
    # multiple, then stack -> one (8,128)-aligned f32 parameter slab.
    lane_w = _round_up(max(max(p.shape[1] for p in raw_pieces), _LANES), _LANES)
    params_slab = jnp.concatenate(
        [jnp.pad(p, ((0, _round_up(p.shape[0], _SUBLANES) - p.shape[0]),
                     (0, lane_w - p.shape[1]))) for p in raw_pieces],
        axis=0)

    out_dim = fc_dims[-1]
    kernel = functools.partial(
        _gcnn_gf_fused_kernel,
        T=T, N=N, K=K, f_dims=tuple(f_dims), fc_dims=tuple(fc_dims),
        off_spow=off_spow, off_wk=tuple(off_wk), off_bg=tuple(off_bg),
        off_fcw=tuple(off_fcw), off_fcb=tuple(off_fcb))

    # Single invocation (no grid): 2 operand DMAs, everything VMEM-resident.
    # vmem_limit_bytes is generous headroom here; re-derive when N/F scale
    # (v7x has only 64 MiB physical VMEM).
    return pl.pallas_call(
        kernel,
        out_shape=jax.ShapeDtypeStruct((T, out_dim), jnp.float32),
        compiler_params=pltpu.CompilerParams(
            vmem_limit_bytes=32 * 1024 * 1024),
    )(x_slab, params_slab)


# ---------------------------------------------------------------------------
# Pure-JAX reference (mirrors the PyTorch module exactly)
# ---------------------------------------------------------------------------
def gcnn_gf_reference(x_tfn, S, gf_params, fc_params):
    T = x_tfn.shape[0]
    z = jnp.transpose(x_tfn, (0, 2, 1))               # [T, N, F0] node-rows
    for (W, b) in gf_params:
        K = W.shape[0]
        zz = z
        acc = jnp.einsum('tnf,fg->tng', zz, W[0])
        for k in range(1, K):
            zz = jnp.einsum('nm,tmf->tnf', S, zz)
            acc = acc + jnp.einsum('tnf,fg->tng', zz, W[k])
        z = jnp.maximum(acc + b, 0.0)
    Flast, N = z.shape[2], z.shape[1]
    # PyTorch: y (shape [T, F, N]).reshape([T, N*F]) == feature-major flatten
    h = jnp.transpose(z, (0, 2, 1)).reshape(T, Flast * N)
    for i, (W, b) in enumerate(fc_params):
        h = h @ W + b
        if i < len(fc_params) - 1:
            h = jnp.maximum(h, 0.0)
    return h


# ---------------------------------------------------------------------------
if __name__ == "__main__":
    # Architecture hyper-parameters (small, consistent with the module)
    T = 2                 # batch
    N = 16                # graph nodes
    F = [4, 8, 8]         # graph-filter feature widths
    K = 3                 # filter order
    M = [32, 16]          # MLP widths

    key = jax.random.PRNGKey(0)
    keys = jax.random.split(key, 16)

    # Deterministic GSO: symmetric, zero-diagonal, normalized by max row sum
    A = jax.random.uniform(keys[0], (N, N), dtype=jnp.float32)
    A = (A + A.T) * 0.5
    A = A - jnp.diag(jnp.diag(A))
    S = A / jnp.max(jnp.sum(jnp.abs(A), axis=1))

    # Graph-filter parameters: W_l [K, F_l, F_{l+1}], b_l [F_{l+1}]
    gf_params = []
    kidx = 1
    for l in range(len(F) - 1):
        scale = 1.0 / jnp.sqrt(jnp.float32(K * F[l]))
        W = scale * jax.random.normal(keys[kidx], (K, F[l], F[l + 1]), dtype=jnp.float32)
        b = 0.01 * jax.random.normal(keys[kidx + 1], (F[l + 1],), dtype=jnp.float32)
        gf_params.append((W, b))
        kidx += 2

    # MLP parameters (stored as [Din, Dout] = torch weight transposed)
    fc_dims = [N * F[-1]] + M
    fc_params = []
    for m in range(len(M)):
        scale = 1.0 / jnp.sqrt(jnp.float32(fc_dims[m]))
        W = scale * jax.random.normal(keys[kidx], (fc_dims[m], fc_dims[m + 1]), dtype=jnp.float32)
        b = 0.01 * jax.random.normal(keys[kidx + 1], (fc_dims[m + 1],), dtype=jnp.float32)
        fc_params.append((W, b))
        kidx += 2

    # Input in PyTorch layout [T, F0, N]
    x = jax.random.normal(keys[kidx], (T, F[0], N), dtype=jnp.float32)

    out = gcnn_gf_forward(x, S, gf_params, fc_params)
    out = jax.block_until_ready(out)

    ref = jax.block_until_ready(gcnn_gf_reference(x, S, gf_params, fc_params))
    assert out.shape == (T, M[-1]), out.shape
    assert jnp.allclose(out, ref, rtol=1e-3, atol=1e-3), "mismatch vs reference"

    print("KERNEL_OK")
</pallas_src>

<mosaic_0001>
module attributes {stable_mosaic.version = 11 : i64} {
  func.func @_gcnn_gf_fused_kernel(%arg0: memref<8x16xf32, #tpu.memory_space<vmem>>, %arg1: memref<272x128xf32, #tpu.memory_space<vmem>>, %arg2: memref<2x16xf32, #tpu.memory_space<vmem>>) attributes {dimension_semantics = [], scalar_prefetch = 0 : i64, scratch_operands = 0 : i64, tpu.core_type = #tpu.core_type<tc>} {
    %c0 = arith.constant 0 : index
    %c0_0 = arith.constant 0 : index
    %0 = vector.load %arg0[%c0, %c0_0] : memref<8x16xf32, #tpu.memory_space<vmem>>, vector<8x16xf32>
    %c0_1 = arith.constant 0 : index
    %c0_2 = arith.constant 0 : index
    %1 = vector.load %arg1[%c0_1, %c0_2] : memref<272x128xf32, #tpu.memory_space<vmem>>, vector<16x16xf32>
    %cst = arith.constant dense<0.000000e+00> : vector<8x16xf32>
    %2 = tpu.matmul %0, %1, %cst {dimension_numbers = #tpu.dot_dimension_numbers<[1], [0], [0], [1], [0, 0, 1, 1], [], []>} : vector<8x16xf32>, vector<16x16xf32>, vector<8x16xf32> -> vector<8x16xf32>
    %c16 = arith.constant 16 : index
    %c0_3 = arith.constant 0 : index
    %3 = vector.load %arg1[%c16, %c0_3] : memref<272x128xf32, #tpu.memory_space<vmem>>, vector<16x16xf32>
    %cst_4 = arith.constant dense<0.000000e+00> : vector<8x16xf32>
    %4 = tpu.matmul %0, %3, %cst_4 {dimension_numbers = #tpu.dot_dimension_numbers<[1], [0], [0], [1], [0, 0, 1, 1], [], []>} : vector<8x16xf32>, vector<16x16xf32>, vector<8x16xf32> -> vector<8x16xf32>
    %5 = tpu.concatenate %0, %2, %4 in 0 : vector<8x16xf32>, vector<8x16xf32>, vector<8x16xf32> -> vector<24x16xf32>
    %c32 = arith.constant 32 : index
    %c0_5 = arith.constant 0 : index
    %6 = vector.load %arg1[%c32, %c0_5] : memref<272x128xf32, #tpu.memory_space<vmem>>, vector<16x24xf32>
    %c48 = arith.constant 48 : index
    %c0_6 = arith.constant 0 : index
    %7 = vector.load %arg1[%c48, %c0_6] : memref<272x128xf32, #tpu.memory_space<vmem>>, vector<16x16xf32>
    %cst_7 = arith.constant dense<0.000000e+00> : vector<16x16xf32>
    %8 = tpu.matmul %6, %5, %cst_7 {dimension_numbers = #tpu.dot_dimension_numbers<[1], [0], [0], [1], [0, 0, 1, 1], [], []>} : vector<16x24xf32>, vector<24x16xf32>, vector<16x16xf32> -> vector<16x16xf32>
    %9 = arith.addf %8, %7 : vector<16x16xf32>
    %cst_8 = arith.constant 0.000000e+00 : f32
    %10 = vector.broadcast %cst_8 : f32 to vector<16x16xf32>
    %11 = arith.maximumf %9, %10 : vector<16x16xf32>
    %c0_9 = arith.constant 0 : index
    %c0_10 = arith.constant 0 : index
    %12 = vector.load %arg1[%c0_9, %c0_10] : memref<272x128xf32, #tpu.memory_space<vmem>>, vector<16x16xf32>
    %cst_11 = arith.constant dense<0.000000e+00> : vector<16x16xf32>
    %13 = tpu.matmul %11, %12, %cst_11 {dimension_numbers = #tpu.dot_dimension_numbers<[1], [0], [0], [1], [0, 0, 1, 1], [], []>} : vector<16x16xf32>, vector<16x16xf32>, vector<16x16xf32> -> vector<16x16xf32>
    %c16_12 = arith.constant 16 : index
    %c0_13 = arith.constant 0 : index
    %14 = vector.load %arg1[%c16_12, %c0_13] : memref<272x128xf32, #tpu.memory_space<vmem>>, vector<16x16xf32>
    %cst_14 = arith.constant dense<0.000000e+00> : vector<16x16xf32>
    %15 = tpu.matmul %11, %14, %cst_14 {dimension_numbers = #tpu.dot_dimension_numbers<[1], [0], [0], [1], [0, 0, 1, 1], [], []>} : vector<16x16xf32>, vector<16x16xf32>, vector<16x16xf32> -> vector<16x16xf32>
    %16 = tpu.concatenate %11, %13, %15 in 0 : vector<16x16xf32>, vector<16x16xf32>, vector<16x16xf32> -> vector<48x16xf32>
    %c64 = arith.constant 64 : index
    %c0_15 = arith.constant 0 : index
    %17 = vector.load %arg1[%c64, %c0_15] : memref<272x128xf32, #tpu.memory_space<vmem>>, vector<16x48xf32>
    %c80 = arith.constant 80 : index
    %c0_16 = arith.constant 0 : index
    %18 = vector.load %arg1[%c80, %c0_16] : memref<272x128xf32, #tpu.memory_space<vmem>>, vector<16x16xf32>
    %cst_17 = arith.constant dense<0.000000e+00> : vector<16x16xf32>
    %19 = tpu.matmul %17, %16, %cst_17 {dimension_numbers = #tpu.dot_dimension_numbers<[1], [0], [0], [1], [0, 0, 1, 1], [], []>} : vector<16x48xf32>, vector<48x16xf32>, vector<16x16xf32> -> vector<16x16xf32>
    %20 = arith.addf %19, %18 : vector<16x16xf32>
    %cst_18 = arith.constant 0.000000e+00 : f32
    %21 = vector.broadcast %cst_18 : f32 to vector<16x16xf32>
    %22 = arith.maximumf %20, %21 : vector<16x16xf32>
    %23 = vector.extract_strided_slice %22 {offsets = [0, 0], sizes = [2, 16], strides = [1, 1]} : vector<16x16xf32> to vector<2x16xf32>
    %c96 = arith.constant 96 : index
    %c0_19 = arith.constant 0 : index
    %24 = vector.load %arg1[%c96, %c0_19] : memref<272x128xf32, #tpu.memory_space<vmem>>, vector<16x32xf32>
    %cst_20 = arith.constant dense<0.000000e+00> : vector<2x32xf32>
    %25 = tpu.matmul %23, %24, %cst_20 {dimension_numbers = #tpu.dot_dimension_numbers<[1], [0], [0], [1], [0, 0, 1, 1], [], []>} : vector<2x16xf32>, vector<16x32xf32>, vector<2x32xf32> -> vector<2x32xf32>
    %26 = vector.extract_strided_slice %22 {offsets = [2, 0], sizes = [2, 16], strides = [1, 1]} : vector<16x16xf32> to vector<2x16xf32>
    %c112 = arith.constant 112 : index
    %c0_21 = arith.constant 0 : index
    %27 = vector.load %arg1[%c112, %c0_21] : memref<272x128xf32, #tpu.memory_space<vmem>>, vector<16x32xf32>
    %cst_22 = arith.constant dense<0.000000e+00> : vector<2x32xf32>
    %28 = tpu.matmul %26, %27, %cst_22 {dimension_numbers = #tpu.dot_dimension_numbers<[1], [0], [0], [1], [0, 0, 1, 1], [], []>} : vector<2x16xf32>, vector<16x32xf32>, vector<2x32xf32> -> vector<2x32xf32>
    %29 = arith.addf %25, %28 : vector<2x32xf32>
    %30 = vector.extract_strided_slice %22 {offsets = [4, 0], sizes = [2, 16], strides = [1, 1]} : vector<16x16xf32> to vector<2x16xf32>
    %c128 = arith.constant 128 : index
    %c0_23 = arith.constant 0 : index
    %31 = vector.load %arg1[%c128, %c0_23] : memref<272x128xf32, #tpu.memory_space<vmem>>, vector<16x32xf32>
    %cst_24 = arith.constant dense<0.000000e+00> : vector<2x32xf32>
    %32 = tpu.matmul %30, %31, %cst_24 {dimension_numbers = #tpu.dot_dimension_numbers<[1], [0], [0], [1], [0, 0, 1, 1], [], []>} : vector<2x16xf32>, vector<16x32xf32>, vector<2x32xf32> -> vector<2x32xf32>
    %33 = arith.addf %29, %32 : vector<2x32xf32>
    %34 = vector.extract_strided_slice %22 {offsets = [6, 0], sizes = [2, 16], strides = [1, 1]} : vector<16x16xf32> to vector<2x16xf32>
    %c144 = arith.constant 144 : index
    %c0_25 = arith.constant 0 : index
    %35 = vector.load %arg1[%c144, %c0_25] : memref<272x128xf32, #tpu.memory_space<vmem>>, vector<16x32xf32>
    %cst_26 = arith.constant dense<0.000000e+00> : vector<2x32xf32>
    %36 = tpu.matmul %34, %35, %cst_26 {dimension_numbers = #tpu.dot_dimension_numbers<[1], [0], [0], [1], [0, 0, 1, 1], [], []>} : vector<2x16xf32>, vector<16x32xf32>, vector<2x32xf32> -> vector<2x32xf32>
    %37 = arith.addf %33, %36 : vector<2x32xf32>
    %38 = vector.extract_strided_slice %22 {offsets = [8, 0], sizes = [2, 16], strides = [1, 1]} : vector<16x16xf32> to vector<2x16xf32>
    %c160 = arith.constant 160 : index
    %c0_27 = arith.constant 0 : index
    %39 = vector.load %arg1[%c160, %c0_27] : memref<272x128xf32, #tpu.memory_space<vmem>>, vector<16x32xf32>
    %cst_28 = arith.constant dense<0.000000e+00> : vector<2x32xf32>
    %40 = tpu.matmul %38, %39, %cst_28 {dimension_numbers = #tpu.dot_dimension_numbers<[1], [0], [0], [1], [0, 0, 1, 1], [], []>} : vector<2x16xf32>, vector<16x32xf32>, vector<2x32xf32> -> vector<2x32xf32>
    %41 = arith.addf %37, %40 : vector<2x32xf32>
    %42 = vector.extract_strided_slice %22 {offsets = [10, 0], sizes = [2, 16], strides = [1, 1]} : vector<16x16xf32> to vector<2x16xf32>
    %c176 = arith.constant 176 : index
    %c0_29 = arith.constant 0 : index
    %43 = vector.load %arg1[%c176, %c0_29] : memref<272x128xf32, #tpu.memory_space<vmem>>, vector<16x32xf32>
    %cst_30 = arith.constant dense<0.000000e+00> : vector<2x32xf32>
    %44 = tpu.matmul %42, %43, %cst_30 {dimension_numbers = #tpu.dot_dimension_numbers<[1], [0], [0], [1], [0, 0, 1, 1], [], []>} : vector<2x16xf32>, vector<16x32xf32>, vector<2x32xf32> -> vector<2x32xf32>
    %45 = arith.addf %41, %44 : vector<2x32xf32>
    %46 = vector.extract_strided_slice %22 {offsets = [12, 0], sizes = [2, 16], strides = [1, 1]} : vector<16x16xf32> to vector<2x16xf32>
    %c192 = arith.constant 192 : index
    %c0_31 = arith.constant 0 : index
    %47 = vector.load %arg1[%c192, %c0_31] : memref<272x128xf32, #tpu.memory_space<vmem>>, vector<16x32xf32>
    %cst_32 = arith.constant dense<0.000000e+00> : vector<2x32xf32>
    %48 = tpu.matmul %46, %47, %cst_32 {dimension_numbers = #tpu.dot_dimension_numbers<[1], [0], [0], [1], [0, 0, 1, 1], [], []>} : vector<2x16xf32>, vector<16x32xf32>, vector<2x32xf32> -> vector<2x32xf32>
    %49 = arith.addf %45, %48 : vector<2x32xf32>
    %50 = vector.extract_strided_slice %22 {offsets = [14, 0], sizes = [2, 16], strides = [1, 1]} : vector<16x16xf32> to vector<2x16xf32>
    %c208 = arith.constant 208 : index
    %c0_33 = arith.constant 0 : index
    %51 = vector.load %arg1[%c208, %c0_33] : memref<272x128xf32, #tpu.memory_space<vmem>>, vector<16x32xf32>
    %cst_34 = arith.constant dense<0.000000e+00> : vector<2x32xf32>
    %52 = tpu.matmul %50, %51, %cst_34 {dimension_numbers = #tpu.dot_dimension_numbers<[1], [0], [0], [1], [0, 0, 1, 1], [], []>} : vector<2x16xf32>, vector<16x32xf32>, vector<2x32xf32> -> vector<2x32xf32>
    %53 = arith.addf %49, %52 : vector<2x32xf32>
    %c224 = arith.constant 224 : index
    %c0_35 = arith.constant 0 : index
    %54 = vector.load %arg1[%c224, %c0_35] : memref<272x128xf32, #tpu.memory_space<vmem>>, vector<1x32xf32>
    %55 = vector.broadcast %54 : vector<1x32xf32> to vector<2x32xf32>
    %56 = arith.addf %53, %55 : vector<2x32xf32>
    %c232 = arith.constant 232 : index
    %c0_36 = arith.constant 0 : index
    %57 = vector.load %arg1[%c232, %c0_36] : memref<272x128xf32, #tpu.memory_space<vmem>>, vector<32x16xf32>
    %c264 = arith.constant 264 : index
    %c0_37 = arith.constant 0 : index
    %58 = vector.load %arg1[%c264, %c0_37] : memref<272x128xf32, #tpu.memory_space<vmem>>, vector<1x16xf32>
    %cst_38 = arith.constant 0.000000e+00 : f32
    %59 = vector.broadcast %cst_38 : f32 to vector<2x32xf32>
    %60 = arith.maximumf %56, %59 : vector<2x32xf32>
    %cst_39 = arith.constant dense<0.000000e+00> : vector<2x16xf32>
    %61 = tpu.matmul %60, %57, %cst_39 {dimension_numbers = #tpu.dot_dimension_numbers<[1], [0], [0], [1], [0, 0, 1, 1], [], []>} : vector<2x32xf32>, vector<32x16xf32>, vector<2x16xf32> -> vector<2x16xf32>
    %62 = vector.broadcast %58 : vector<1x16xf32> to vector<2x16xf32>
    %63 = arith.addf %61, %62 : vector<2x16xf32>
    %c0_40 = arith.constant 0 : index
    %c0_41 = arith.constant 0 : index
    %64 = vector.load %arg2[%c0_40, %c0_41] : memref<2x16xf32, #tpu.memory_space<vmem>>, vector<2x16xf32>
    tpu.vector_store %arg2[%c0_40, %c0_41], %63 {strides = array<i32>} : memref<2x16xf32, #tpu.memory_space<vmem>>, vector<2x16xf32>,
    return
  }
}

</mosaic_0001>

<llo_original>
// kernel: tpu_custom_call.1
$region0: #{tpu_custom_call.1}
  #allocation0 [shape = 'u32[]', space=smem, size = 0x4, offset = 0x4, fixed_abs, tag = 'smem constant byte address 0x4 - core index']
  #allocation1 [shape = 'u32[144,128]{1,0:T(1,128)}', space=vmem, size = 0x12000, scoped, tag = 'internal scratch']
  %s0 = inlined_call_operand.hbm [shape: f32[8,16], index: 0, kind: input, shape index: {}]
  %s1 = inlined_call_operand.hbm [shape: f32[272,128], index: 1, kind: input, shape index: {}]
  %s2 = inlined_call_operand.hbm [shape: f32[2,16], index: 2, kind: output, shape index: {}]
  %s3 = sld [smem:[#allocation0]]
  $region26: #{tpu_custom_call.1} parent=0
    _
  %s5 = ssub.s32 1, %s3
  %s6 = scalar_select 0, %s5, %s3
  $region1: #{tpu_custom_call.1} parent=0
    #allocation2 [shape = 'u8[4096]{0}', space=vmem, size = 0x1000, scoped, tag = 'input window, operand 0, single buffered']
    #allocation3 [shape = 's32[1]{0}', space=sflag, size = 0x4, scoped, tag = 'scoped memory for tpu_custom_call.1']
    #allocation4 [shape = 's32[1]{0}', space=sflag, size = 0x4, scoped, tag = 'scoped memory for tpu_custom_call.1']
    #allocation5 [shape = 'u8[139264]{0}', space=vmem, size = 0x22000, scoped, tag = 'input window, operand 1, single buffered']
    #allocation6 [shape = 's32[1]{0}', space=sflag, size = 0x4, scoped, tag = 'scoped memory for tpu_custom_call.1']
    #allocation7 [shape = 'u8[1024]{0}', space=vmem, size = 0x400, scoped, tag = 'output window, operand 0, single buffered']
    %7 = vsyncpa [#allocation3], 0
    %8 = vsyncpa [#allocation6], 0
    %9 = vsyncpa [#allocation4], 0
    // Predicated region
    $region2: #{tpu_custom_call.1} parent=1 // pred_check
      _
    $region3: #{tpu_custom_call.1} parent=1 // pred_check_branch
      %11 = sbr.rel (0) target = $region5
    $region4: #{tpu_custom_call.1} parent=1 // pred_region
      %s13 = ssub.s32 128, 128
      %14 = vsyncadd [#allocation3], %s13
      %s16 = sshll.u32 [#allocation2], 4
      %s17 = int_to_ptr.vmem [resolvable:$true] %s16
      %19 = dma.hbm_to_vmem [thread:$0]  %s0, 128, %s17, [#allocation3]
    $region5: #{tpu_custom_call.1} parent=1 // pred_fallthru
      _
    // Predicated region
    $region6: #{tpu_custom_call.1} parent=1 // pred_check
      _
    $region7: #{tpu_custom_call.1} parent=1 // pred_check_branch
      %21 = sbr.rel (0) target = $region9
    $region8: #{tpu_custom_call.1} parent=1 // pred_region
      %s23 = ssub.s32 4352, 4352
      %24 = vsyncadd [#allocation6], %s23
      %s25 = sshll.u32 [#allocation5], 4
      %s26 = int_to_ptr.vmem [resolvable:$true] %s25
      %31 = dma.hbm_to_vmem [thread:$0]  %s1, 4352, %s26, [#allocation6], 128, 128, 8
    $region9: #{tpu_custom_call.1} parent=1 // pred_fallthru
      _
    // Predicated region
    $region10: #{tpu_custom_call.1} parent=1 // pred_check
      _
    $region11: #{tpu_custom_call.1} parent=1 // pred_check_branch
      %33 = sbr.rel (0) target = $region13
    $region12: #{tpu_custom_call.1} parent=1 // pred_region
      %34 = dma.done [#allocation3], 128
    $region13: #{tpu_custom_call.1} parent=1 // pred_fallthru
      _
    // Predicated region
    $region14: #{tpu_custom_call.1} parent=1 // pred_check
      _
    $region15: #{tpu_custom_call.1} parent=1 // pred_check_branch
      %36 = sbr.rel (0) target = $region17
    $region16: #{tpu_custom_call.1} parent=1 // pred_region
      %37 = dma.done [#allocation6], 4352
    $region17: #{tpu_custom_call.1} parent=1 // pred_fallthru
      _
    %v38 = vld [vmem:[#allocation2] sm:$0xff]
    %v39 = vld [vmem:[#allocation5] sm:$0xff]
    %v40 = vld [vmem:[#allocation5 + $0x8] sm:$0xff]
    %vm41 = vcmask 130048
    %v43 = vsel %vm41, %v38, 0
    %45 = vmatprep.subr.mxu0 0.0
    %46 = vmatpush1.msra.mxu0 %v39
    %47 = vmatprep.subr.mxu0 0.0
    %48 = vmatpush1.msra.mxu0 %v40
    %49 = vmatprep.subr.mxu0 0.0
    %50 = vmatpush1.msra.mxu0 0.0
    %51 = vmatprep.subr.mxu0 0.0
    %52 = vmatpush1.msra.mxu0 0.0
    %53 = vmatprep.subr.mxu0 0.0
    %54 = vmatpush1.msra.mxu0 0.0
    %55 = vmatprep.subr.mxu0 0.0
    %56 = vmatpush1.msra.mxu0 0.0
    %57 = vmatprep.subr.mxu0 0.0
    %58 = vmatpush1.msra.mxu0 0.0
    %59 = vmatprep.subr.mxu0 0.0
    %60 = vmatpush1.msra.mxu0 0.0
    %61 = vmatprep.subr.mxu0 0.0
    %62 = vmatpush1.msra.mxu0 0.0
    %63 = vmatprep.subr.mxu0 0.0
    %64 = vmatpush1.msra.mxu0 0.0
    %65 = vmatprep.subr.mxu0 0.0
    %66 = vmatpush1.msra.mxu0 0.0
    %67 = vmatprep.subr.mxu0 0.0
    %68 = vmatpush1.msra.mxu0 0.0
    %69 = vmatprep.subr.mxu0 0.0
    %70 = vmatpush1.msra.mxu0 0.0
    %71 = vmatprep.subr.mxu0 0.0
    %72 = vmatpush1.msra.mxu0 0.0
    %73 = vmatprep.subr.mxu0 0.0
    %74 = vmatpush1.msra.mxu0 0.0
    %75 = vmatprep.subr.mxu0 0.0
    %76 = vmatpush1.msra.mxu0 0.0
    %77 = vmatprep.subr.mxu0 0.0
    %78 = vmatpush1.msra.mxu0 0.0
    %79 = vmatprep.subr.mxu0 0.0
    %80 = vmatpush1.msra.mxu0 0.0
    %81 = vmatprep.subr.mxu0 0.0
    %82 = vmatpush1.msra.mxu0 0.0
    %83 = vmatprep.subr.mxu0 0.0
    %84 = vmatpush1.msra.mxu0 0.0
    %85 = vmatprep.subr.mxu0 0.0
    %86 = vmatpush1.msra.mxu0 0.0
    %87 = vmatprep.subr.mxu0 0.0
    %88 = vmatpush1.msra.mxu0 0.0
    %89 = vmatprep.subr.mxu0 0.0
    %90 = vmatpush1.msra.mxu0 0.0
    %91 = vmatprep.subr.mxu0 0.0
    %92 = vmatpush1.msra.mxu0 0.0
    %93 = vmatprep.subr.mxu0 0.0
    %94 = vmatpush1.msra.mxu0 0.0
    %95 = vmatprep.subr.mxu0 0.0
    %96 = vmatpush1.msra.mxu0 0.0
    %97 = vmatprep.subr.mxu0 0.0
    %98 = vmatpush1.msra.mxu0 0.0
    %99 = vmatprep.subr.mxu0 0.0
    %100 = vmatpush1.msra.mxu0 0.0
    %101 = vmatprep.subr.mxu0 0.0
    %102 = vmatpush1.msra.mxu0 0.0
    %103 = vmatprep.subr.mxu0 0.0
    %104 = vmatpush1.msra.mxu0 0.0
    %105 = vmatprep.subr.mxu0 0.0
    %106 = vmatpush1.msra.mxu0 0.0
    %107 = vmatprep.subr.mxu0 0.0
    %108 = vmatpush1.msra.mxu0 0.0
    %109 = vmatprep.mubr.f32.mxu0 0.0
    %110 = vmatmul.mubr.f32.gmra.mrb[0].mxu0 %v43
    %v111 = vpop.f32.mrb[0].mxu0
    %v112 = vadd.f32 0.0, %v111
    %v113 = vpop.f32.mrb[0].mxu0
    %114 = vdwg.mxu0
    %v115 = vld [vmem:[#allocation5 + $0x10] sm:$0xff]
    %v116 = vld [vmem:[#allocation5 + $0x18] sm:$0xff]
    %117 = vmatprep.subr.mxu0 0.0
    %118 = vmatpush1.msra.mxu0 %v115
    %119 = vmatprep.subr.mxu0 0.0
    %120 = vmatpush1.msra.mxu0 %v116
    %121 = vmatprep.subr.mxu0 0.0
    %122 = vmatpush1.msra.mxu0 0.0
    %123 = vmatprep.subr.mxu0 0.0
    %124 = vmatpush1.msra.mxu0 0.0
    %125 = vmatprep.subr.mxu0 0.0
    %126 = vmatpush1.msra.mxu0 0.0
    %127 = vmatprep.subr.mxu0 0.0
    %128 = vmatpush1.msra.mxu0 0.0
    %129 = vmatprep.subr.mxu0 0.0
    %130 = vmatpush1.msra.mxu0 0.0
    %131 = vmatprep.subr.mxu0 0.0
    %132 = vmatpush1.msra.mxu0 0.0
    %133 = vmatprep.subr.mxu0 0.0
    %134 = vmatpush1.msra.mxu0 0.0
    %135 = vmatprep.subr.mxu0 0.0
    %136 = vmatpush1.msra.mxu0 0.0
    %137 = vmatprep.subr.mxu0 0.0
    %138 = vmatpush1.msra.mxu0 0.0
    %139 = vmatprep.subr.mxu0 0.0
    %140 = vmatpush1.msra.mxu0 0.0
    %141 = vmatprep.subr.mxu0 0.0
    %142 = vmatpush1.msra.mxu0 0.0
    %143 = vmatprep.subr.mxu0 0.0
    %144 = vmatpush1.msra.mxu0 0.0
    %145 = vmatprep.subr.mxu0 0.0
    %146 = vmatpush1.msra.mxu0 0.0
    %147 = vmatprep.subr.mxu0 0.0
    %148 = vmatpush1.msra.mxu0 0.0
    %149 = vmatprep.subr.mxu0 0.0
    %150 = vmatpush1.msra.mxu0 0.0
    %151 = vmatprep.subr.mxu0 0.0
    %152 = vmatpush1.msra.mxu0 0.0
    %153 = vmatprep.subr.mxu0 0.0
    %154 = vmatpush1.msra.mxu0 0.0
    %155 = vmatprep.subr.mxu0 0.0
    %156 = vmatpush1.msra.mxu0 0.0
    %157 = vmatprep.subr.mxu0 0.0
    %158 = vmatpush1.msra.mxu0 0.0
    %159 = vmatprep.subr.mxu0 0.0
    %160 = vmatpush1.msra.mxu0 0.0
    %161 = vmatprep.subr.mxu0 0.0
    %162 = vmatpush1.msra.mxu0 0.0
    %163 = vmatprep.subr.mxu0 0.0
    %164 = vmatpush1.msra.mxu0 0.0
    %165 = vmatprep.subr.mxu0 0.0
    %166 = vmatpush1.msra.mxu0 0.0
    %167 = vmatprep.subr.mxu0 0.0
    %168 = vmatpush1.msra.mxu0 0.0
    %169 = vmatprep.subr.mxu0 0.0
    %170 = vmatpush1.msra.mxu0 0.0
    %171 = vmatprep.subr.mxu0 0.0
    %172 = vmatpush1.msra.mxu0 0.0
    %173 = vmatprep.subr.mxu0 0.0
    %174 = vmatpush1.msra.mxu0 0.0
    %175 = vmatprep.subr.mxu0 0.0
    %176 = vmatpush1.msra.mxu0 0.0
    %177 = vmatprep.subr.mxu0 0.0
    %178 = vmatpush1.msra.mxu0 0.0
    %179 = vmatprep.subr.mxu0 0.0
    %180 = vmatpush1.msra.mxu0 0.0
    %181 = vmatprep.mubr.f32.mxu0 0.0
    %182 = vmatmul.mubr.f32.gmra.mrb[0].mxu0 %v43
    %v183 = vpop.f32.mrb[0].mxu0
    %v184 = vadd.f32 0.0, %v183
    %v185 = vpop.f32.mrb[0].mxu0
    %186 = vdwg.mxu0
    %v187 = vld [vmem:[#allocation5 + $0x20] sm:$0xff]
    %v188 = vld [vmem:[#allocation5 + $0x28] sm:$0xff]
    %v189 = vld [vmem:[#allocation5 + $0x30] sm:$0xff]
    %v190 = vld [vmem:[#allocation5 + $0x38] sm:$0xff]
    %vm191 = vcmask 195584
    %v193 = vsel %vm191, %v187, 0
    %v196 = vsel %vm191, %v188, 0
    %198 = vmatprep.subr.mxu0 0.0
    %199 = vmatpush1.msra.mxu0 %v38
    %200 = vmatprep.subr.mxu0 0.0
    %201 = vmatpush1.msra.mxu0 %v112
    %202 = vmatprep.subr.mxu0 0.0
    %203 = vmatpush1.msra.mxu0 %v184
    %204 = vmatprep.subr.mxu0 0.0
    %205 = vmatpush1.msra.mxu0 0.0
    %206 = vmatprep.subr.mxu0 0.0
    %207 = vmatpush1.msra.mxu0 0.0
    %208 = vmatprep.subr.mxu0 0.0
    %209 = vmatpush1.msra.mxu0 0.0
    %210 = vmatprep.subr.mxu0 0.0
    %211 = vmatpush1.msra.mxu0 0.0
    %212 = vmatprep.subr.mxu0 0.0
    %213 = vmatpush1.msra.mxu0 0.0
    %214 = vmatprep.subr.mxu0 0.0
    %215 = vmatpush1.msra.mxu0 0.0
    %216 = vmatprep.subr.mxu0 0.0
    %217 = vmatpush1.msra.mxu0 0.0
    %218 = vmatprep.subr.mxu0 0.0
    %219 = vmatpush1.msra.mxu0 0.0
    %220 = vmatprep.subr.mxu0 0.0
    %221 = vmatpush1.msra.mxu0 0.0
    %222 = vmatprep.subr.mxu0 0.0
    %223 = vmatpush1.msra.mxu0 0.0
    %224 = vmatprep.subr.mxu0 0.0
    %225 = vmatpush1.msra.mxu0 0.0
    %226 = vmatprep.subr.mxu0 0.0
    %227 = vmatpush1.msra.mxu0 0.0
    %228 = vmatprep.subr.mxu0 0.0
    %229 = vmatpush1.msra.mxu0 0.0
    %230 = vmatprep.subr.mxu0 0.0
    %231 = vmatpush1.msra.mxu0 0.0
    %232 = vmatprep.subr.mxu0 0.0
    %233 = vmatpush1.msra.mxu0 0.0
    %234 = vmatprep.subr.mxu0 0.0
    %235 = vmatpush1.msra.mxu0 0.0
    %236 = vmatprep.subr.mxu0 0.0
    %237 = vmatpush1.msra.mxu0 0.0
    %238 = vmatprep.subr.mxu0 0.0
    %239 = vmatpush1.msra.mxu0 0.0
    %240 = vmatprep.subr.mxu0 0.0
    %241 = vmatpush1.msra.mxu0 0.0
    %242 = vmatprep.subr.mxu0 0.0
    %243 = vmatpush1.msra.mxu0 0.0
    %244 = vmatprep.subr.mxu0 0.0
    %245 = vmatpush1.msra.mxu0 0.0
    %246 = vmatprep.subr.mxu0 0.0
    %247 = vmatpush1.msra.mxu0 0.0
    %248 = vmatprep.subr.mxu0 0.0
    %249 = vmatpush1.msra.mxu0 0.0
    %250 = vmatprep.subr.mxu0 0.0
    %251 = vmatpush1.msra.mxu0 0.0
    %252 = vmatprep.subr.mxu0 0.0
    %253 = vmatpush1.msra.mxu0 0.0
    %254 = vmatprep.subr.mxu0 0.0
    %255 = vmatpush1.msra.mxu0 0.0
    %256 = vmatprep.subr.mxu0 0.0
    %257 = vmatpush1.msra.mxu0 0.0
    %258 = vmatprep.subr.mxu0 0.0
    %259 = vmatpush1.msra.mxu0 0.0
    %260 = vmatprep.subr.mxu0 0.0
    %261 = vmatpush1.msra.mxu0 0.0
    %262 = vmatprep.mubr.f32.mxu0 0.0
    %263 = vmatmul.mubr.f32.gmra.mrb[0].mxu0 %v193
    %v264 = vpop.f32.mrb[0].mxu0
    %v265 = vadd.f32 %v189, %v264
    %v266 = vpop.f32.mrb[0].mxu0
    %267 = vmatprep.mubr.f32.mxu0 0.0
    %268 = vmatmul.mubr.f32.gmra.mrb[0].mxu0 %v196
    %v269 = vpop.f32.mrb[0].mxu0
    %v270 = vadd.f32 %v190, %v269
    %v271 = vpop.f32.mrb[0].mxu0
    %272 = vdwg.mxu0
    %v273 = vmax.f32 %v265, 0.0
    %v274 = vmax.f32 %v270, 0.0
    %v276 = vsel %vm41, %v273, 0
    %v279 = vsel %vm41, %v274, 0
    %281 = vmatprep.subr.mxu0 0.0
    %282 = vmatpush1.msra.mxu0 %v39
    %283 = vmatprep.subr.mxu0 0.0
    %284 = vmatpush1.msra.mxu0 %v40
    %285 = vmatprep.subr.mxu0 0.0
    %286 = vmatpush1.msra.mxu0 0.0
    %287 = vmatprep.subr.mxu0 0.0
    %288 = vmatpush1.msra.mxu0 0.0
    %289 = vmatprep.subr.mxu0 0.0
    %290 = vmatpush1.msra.mxu0 0.0
    %291 = vmatprep.subr.mxu0 0.0
    %292 = vmatpush1.msra.mxu0 0.0
    %293 = vmatprep.subr.mxu0 0.0
    %294 = vmatpush1.msra.mxu0 0.0
    %295 = vmatprep.subr.mxu0 0.0
    %296 = vmatpush1.msra.mxu0 0.0
    %297 = vmatprep.subr.mxu0 0.0
    %298 = vmatpush1.msra.mxu0 0.0
    %299 = vmatprep.subr.mxu0 0.0
    %300 = vmatpush1.msra.mxu0 0.0
    %301 = vmatprep.subr.mxu0 0.0
    %302 = vmatpush1.msra.mxu0 0.0
    %303 = vmatprep.subr.mxu0 0.0
    %304 = vmatpush1.msra.mxu0 0.0
    %305 = vmatprep.subr.mxu0 0.0
    %306 = vmatpush1.msra.mxu0 0.0
    %307 = vmatprep.subr.mxu0 0.0
    %308 = vmatpush1.msra.mxu0 0.0
    %309 = vmatprep.subr.mxu0 0.0
    %310 = vmatpush1.msra.mxu0 0.0
    %311 = vmatprep.subr.mxu0 0.0
    %312 = vmatpush1.msra.mxu0 0.0
    %313 = vmatprep.subr.mxu0 0.0
    %314 = vmatpush1.msra.mxu0 0.0
    %315 = vmatprep.subr.mxu0 0.0
    %316 = vmatpush1.msra.mxu0 0.0
    %317 = vmatprep.subr.mxu0 0.0
    %318 = vmatpush1.msra.mxu0 0.0
    %319 = vmatprep.subr.mxu0 0.0
    %320 = vmatpush1.msra.mxu0 0.0
    %321 = vmatprep.subr.mxu0 0.0
    %322 = vmatpush1.msra.mxu0 0.0
    %323 = vmatprep.subr.mxu0 0.0
    %324 = vmatpush1.msra.mxu0 0.0
    %325 = vmatprep.subr.mxu0 0.0
    %326 = vmatpush1.msra.mxu0 0.0
    %327 = vmatprep.subr.mxu0 0.0
    %328 = vmatpush1.msra.mxu0 0.0
    %329 = vmatprep.subr.mxu0 0.0
    %330 = vmatpush1.msra.mxu0 0.0
    %331 = vmatprep.subr.mxu0 0.0
    %332 = vmatpush1.msra.mxu0 0.0
    %333 = vmatprep.subr.mxu0 0.0
    %334 = vmatpush1.msra.mxu0 0.0
    %335 = vmatprep.subr.mxu0 0.0
    %336 = vmatpush1.msra.mxu0 0.0
    %337 = vmatprep.subr.mxu0 0.0
    %338 = vmatpush1.msra.mxu0 0.0
    %339 = vmatprep.subr.mxu0 0.0
    %340 = vmatpush1.msra.mxu0 0.0
    %341 = vmatprep.subr.mxu0 0.0
    %342 = vmatpush1.msra.mxu0 0.0
    %343 = vmatprep.subr.mxu0 0.0
    %344 = vmatpush1.msra.mxu0 0.0
    %345 = vmatprep.mubr.f32.mxu0 0.0
    %346 = vmatmul.mubr.f32.gmra.mrb[0].mxu0 %v276
    %v347 = vpop.f32.mrb[0].mxu0
    %v348 = vadd.f32 0.0, %v347
    %v349 = vpop.f32.mrb[0].mxu0
    %350 = vmatprep.mubr.f32.mxu0 0.0
    %351 = vmatmul.mubr.f32.gmra.mrb[0].mxu0 %v279
    %v352 = vpop.f32.mrb[0].mxu0
    %v353 = vadd.f32 0.0, %v352
    %v354 = vpop.f32.mrb[0].mxu0
    %355 = vdwg.mxu0
    %356 = vmatprep.subr.mxu0 0.0
    %357 = vmatpush1.msra.mxu0 %v115
    %358 = vmatprep.subr.mxu0 0.0
    %359 = vmatpush1.msra.mxu0 %v116
    %360 = vmatprep.subr.mxu0 0.0
    %361 = vmatpush1.msra.mxu0 0.0
    %362 = vmatprep.subr.mxu0 0.0
    %363 = vmatpush1.msra.mxu0 0.0
    %364 = vmatprep.subr.mxu0 0.0
    %365 = vmatpush1.msra.mxu0 0.0
    %366 = vmatprep.subr.mxu0 0.0
    %367 = vmatpush1.msra.mxu0 0.0
    %368 = vmatprep.subr.mxu0 0.0
    %369 = vmatpush1.msra.mxu0 0.0
    %370 = vmatprep.subr.mxu0 0.0
    %371 = vmatpush1.msra.mxu0 0.0
    %372 = vmatprep.subr.mxu0 0.0
    %373 = vmatpush1.msra.mxu0 0.0
    %374 = vmatprep.subr.mxu0 0.0
    %375 = vmatpush1.msra.mxu0 0.0
    %376 = vmatprep.subr.mxu0 0.0
    %377 = vmatpush1.msra.mxu0 0.0
    %378 = vmatprep.subr.mxu0 0.0
    %379 = vmatpush1.msra.mxu0 0.0
    %380 = vmatprep.subr.mxu0 0.0
    %381 = vmatpush1.msra.mxu0 0.0
    %382 = vmatprep.subr.mxu0 0.0
    %383 = vmatpush1.msra.mxu0 0.0
    %384 = vmatprep.subr.mxu0 0.0
    %385 = vmatpush1.msra.mxu0 0.0
    %386 = vmatprep.subr.mxu0 0.0
    %387 = vmatpush1.msra.mxu0 0.0
    %388 = vmatprep.subr.mxu0 0.0
    %389 = vmatpush1.msra.mxu0 0.0
    %390 = vmatprep.subr.mxu0 0.0
    %391 = vmatpush1.msra.mxu0 0.0
    %392 = vmatprep.subr.mxu0 0.0
    %393 = vmatpush1.msra.mxu0 0.0
    %394 = vmatprep.subr.mxu0 0.0
    %395 = vmatpush1.msra.mxu0 0.0
    %396 = vmatprep.subr.mxu0 0.0
    %397 = vmatpush1.msra.mxu0 0.0
    %398 = vmatprep.subr.mxu0 0.0
    %399 = vmatpush1.msra.mxu0 0.0
    %400 = vmatprep.subr.mxu0 0.0
    %401 = vmatpush1.msra.mxu0 0.0
    %402 = vmatprep.subr.mxu0 0.0
    %403 = vmatpush1.msra.mxu0 0.0
    %404 = vmatprep.subr.mxu0 0.0
    %405 = vmatpush1.msra.mxu0 0.0
    %406 = vmatprep.subr.mxu0 0.0
    %407 = vmatpush1.msra.mxu0 0.0
    %408 = vmatprep.subr.mxu0 0.0
    %409 = vmatpush1.msra.mxu0 0.0
    %410 = vmatprep.subr.mxu0 0.0
    %411 = vmatpush1.msra.mxu0 0.0
    %412 = vmatprep.subr.mxu0 0.0
    %413 = vmatpush1.msra.mxu0 0.0
    %414 = vmatprep.subr.mxu0 0.0
    %415 = vmatpush1.msra.mxu0 0.0
    %416 = vmatprep.subr.mxu0 0.0
    %417 = vmatpush1.msra.mxu0 0.0
    %418 = vmatprep.subr.mxu0 0.0
    %419 = vmatpush1.msra.mxu0 0.0
    %420 = vmatprep.mubr.f32.mxu0 0.0
    %421 = vmatmul.mubr.f32.gmra.mrb[0].mxu0 %v276
    %v422 = vpop.f32.mrb[0].mxu0
    %v423 = vadd.f32 0.0, %v422
    %v424 = vpop.f32.mrb[0].mxu0
    %425 = vmatprep.mubr.f32.mxu0 0.0
    %426 = vmatmul.mubr.f32.gmra.mrb[0].mxu0 %v279
    %v427 = vpop.f32.mrb[0].mxu0
    %v428 = vadd.f32 0.0, %v427
    %v429 = vpop.f32.mrb[0].mxu0
    %430 = vdwg.mxu0
    %v431 = vld [vmem:[#allocation5 + $0x40] sm:$0xff]
    %v432 = vld [vmem:[#allocation5 + $0x48] sm:$0xff]
    %v433 = vld [vmem:[#allocation5 + $0x50] sm:$0xff]
    %v434 = vld [vmem:[#allocation5 + $0x58] sm:$0xff]
    %vm435 = vcmask 392192
    %v437 = vsel %vm435, %v431, 0
    %v440 = vsel %vm435, %v432, 0
    %442 = vmatprep.subr.mxu0 0.0
    %443 = vmatpush1.msra.mxu0 %v273
    %444 = vmatprep.subr.mxu0 0.0
    %445 = vmatpush1.msra.mxu0 %v274
    %446 = vmatprep.subr.mxu0 0.0
    %447 = vmatpush1.msra.mxu0 %v348
    %448 = vmatprep.subr.mxu0 0.0
    %449 = vmatpush1.msra.mxu0 %v353
    %450 = vmatprep.subr.mxu0 0.0
    %451 = vmatpush1.msra.mxu0 %v423
    %452 = vmatprep.subr.mxu0 0.0
    %453 = vmatpush1.msra.mxu0 %v428
    %454 = vmatprep.subr.mxu0 0.0
    %455 = vmatpush1.msra.mxu0 0.0
    %456 = vmatprep.subr.mxu0 0.0
    %457 = vmatpush1.msra.mxu0 0.0
    %458 = vmatprep.subr.mxu0 0.0
    %459 = vmatpush1.msra.mxu0 0.0
    %460 = vmatprep.subr.mxu0 0.0
    %461 = vmatpush1.msra.mxu0 0.0
    %462 = vmatprep.subr.mxu0 0.0
    %463 = vmatpush1.msra.mxu0 0.0
    %464 = vmatprep.subr.mxu0 0.0
    %465 = vmatpush1.msra.mxu0 0.0
    %466 = vmatprep.subr.mxu0 0.0
    %467 = vmatpush1.msra.mxu0 0.0
    %468 = vmatprep.subr.mxu0 0.0
    %469 = vmatpush1.msra.mxu0 0.0
    %470 = vmatprep.subr.mxu0 0.0
    %471 = vmatpush1.msra.mxu0 0.0
    %472 = vmatprep.subr.mxu0 0.0
    %473 = vmatpush1.msra.mxu0 0.0
    %474 = vmatprep.subr.mxu0 0.0
    %475 = vmatpush1.msra.mxu0 0.0
    %476 = vmatprep.subr.mxu0 0.0
    %477 = vmatpush1.msra.mxu0 0.0
    %478 = vmatprep.subr.mxu0 0.0
    %479 = vmatpush1.msra.mxu0 0.0
    %480 = vmatprep.subr.mxu0 0.0
    %481 = vmatpush1.msra.mxu0 0.0
    %482 = vmatprep.subr.mxu0 0.0
    %483 = vmatpush1.msra.mxu0 0.0
    %484 = vmatprep.subr.mxu0 0.0
    %485 = vmatpush1.msra.mxu0 0.0
    %486 = vmatprep.subr.mxu0 0.0
    %487 = vmatpush1.msra.mxu0 0.0
    %488 = vmatprep.subr.mxu0 0.0
    %489 = vmatpush1.msra.mxu0 0.0
    %490 = vmatprep.subr.mxu0 0.0
    %491 = vmatpush1.msra.mxu0 0.0
    %492 = vmatprep.subr.mxu0 0.0
    %493 = vmatpush1.msra.mxu0 0.0
    %494 = vmatprep.subr.mxu0 0.0
    %495 = vmatpush1.msra.mxu0 0.0
    %496 = vmatprep.subr.mxu0 0.0
    %497 = vmatpush1.msra.mxu0 0.0
    %498 = vmatprep.subr.mxu0 0.0
    %499 = vmatpush1.msra.mxu0 0.0
    %500 = vmatprep.subr.mxu0 0.0
    %501 = vmatpush1.msra.mxu0 0.0
    %502 = vmatprep.subr.mxu0 0.0
    %503 = vmatpush1.msra.mxu0 0.0
    %504 = vmatprep.subr.mxu0 0.0
    %505 = vmatpush1.msra.mxu0 0.0
    %506 = vmatprep.mubr.f32.mxu0 0.0
    %507 = vmatmul.mubr.f32.gmra.mrb[0].mxu0 %v437
    %v508 = vpop.f32.mrb[0].mxu0
    %v509 = vadd.f32 %v433, %v508
    %v510 = vpop.f32.mrb[0].mxu0
    %511 = vmatprep.mubr.f32.mxu0 0.0
    %512 = vmatmul.mubr.f32.gmra.mrb[0].mxu0 %v440
    %v513 = vpop.f32.mrb[0].mxu0
    %v514 = vadd.f32 %v434, %v513
    %v515 = vpop.f32.mrb[0].mxu0
    %516 = vdwg.mxu0
    %v517 = vmax.f32 %v509, 0.0
    %v518 = vmax.f32 %v514, 0.0
    %v519 = vld [vmem:[#allocation5 + $0x60] sm:$0xff]
    %v520 = vld [vmem:[#allocation5 + $0x68] sm:$0xff]
    %v521 = vld [vmem:[#allocation5 + $0x70] sm:$0xff]
    %v522 = vld [vmem:[#allocation5 + $0x78] sm:$0xff]
    %v524 = vrot.slane %v517, 2
    %v525 = vsel %vm41, %v524, 0
    %527 = vmatprep.subr.mxu0 0.0
    %528 = vmatpush1.msra.mxu0 %v521
    %529 = vmatprep.subr.mxu0 0.0
    %530 = vmatpush1.msra.mxu0 %v522
    %531 = vmatprep.subr.mxu0 0.0
    %532 = vmatpush1.msra.mxu0 0.0
    %533 = vmatprep.subr.mxu0 0.0
    %534 = vmatpush1.msra.mxu0 0.0
    %535 = vmatprep.subr.mxu0 0.0
    %536 = vmatpush1.msra.mxu0 0.0
    %537 = vmatprep.subr.mxu0 0.0
    %538 = vmatpush1.msra.mxu0 0.0
    %539 = vmatprep.subr.mxu0 0.0
    %540 = vmatpush1.msra.mxu0 0.0
    %541 = vmatprep.subr.mxu0 0.0
    %542 = vmatpush1.msra.mxu0 0.0
    %543 = vmatprep.subr.mxu0 0.0
    %544 = vmatpush1.msra.mxu0 0.0
    %545 = vmatprep.subr.mxu0 0.0
    %546 = vmatpush1.msra.mxu0 0.0
    %547 = vmatprep.subr.mxu0 0.0
    %548 = vmatpush1.msra.mxu0 0.0
    %549 = vmatprep.subr.mxu0 0.0
    %550 = vmatpush1.msra.mxu0 0.0
    %551 = vmatprep.subr.mxu0 0.0
    %552 = vmatpush1.msra.mxu0 0.0
    %553 = vmatprep.subr.mxu0 0.0
    %554 = vmatpush1.msra.mxu0 0.0
    %555 = vmatprep.subr.mxu0 0.0
    %556 = vmatpush1.msra.mxu0 0.0
    %557 = vmatprep.subr.mxu0 0.0
    %558 = vmatpush1.msra.mxu0 0.0
    %559 = vmatprep.subr.mxu0 0.0
    %560 = vmatpush1.msra.mxu0 0.0
    %561 = vmatprep.subr.mxu0 0.0
    %562 = vmatpush1.msra.mxu0 0.0
    %563 = vmatprep.subr.mxu0 0.0
    %564 = vmatpush1.msra.mxu0 0.0
    %565 = vmatprep.subr.mxu0 0.0
    %566 = vmatpush1.msra.mxu0 0.0
    %567 = vmatprep.subr.mxu0 0.0
    %568 = vmatpush1.msra.mxu0 0.0
    %569 = vmatprep.subr.mxu0 0.0
    %570 = vmatpush1.msra.mxu0 0.0
    %571 = vmatprep.subr.mxu0 0.0
    %572 = vmatpush1.msra.mxu0 0.0
    %573 = vmatprep.subr.mxu0 0.0
    %574 = vmatpush1.msra.mxu0 0.0
    %575 = vmatprep.subr.mxu0 0.0
    %576 = vmatpush1.msra.mxu0 0.0
    %577 = vmatprep.subr.mxu0 0.0
    %578 = vmatpush1.msra.mxu0 0.0
    %579 = vmatprep.subr.mxu0 0.0
    %580 = vmatpush1.msra.mxu0 0.0
    %581 = vmatprep.subr.mxu0 0.0
    %582 = vmatpush1.msra.mxu0 0.0
    %583 = vmatprep.subr.mxu0 0.0
    %584 = vmatpush1.msra.mxu0 0.0
    %585 = vmatprep.subr.mxu0 0.0
    %586 = vmatpush1.msra.mxu0 0.0
    %587 = vmatprep.subr.mxu0 0.0
    %588 = vmatpush1.msra.mxu0 0.0
    %589 = vmatprep.subr.mxu0 0.0
    %590 = vmatpush1.msra.mxu0 0.0
    %591 = vmatprep.mubr.f32.mxu0 0.0
    %592 = vmatmul.mubr.f32.gmra.mrb[0].mxu0 %v525
    %v593 = vpop.f32.mrb[0].mxu0
    %v594 = vadd.f32 0.0, %v593
    %v595 = vpop.f32.mrb[0].mxu0
    %596 = vdwg.mxu0
    %v597 = vsel %vm41, %v517, 0
    %599 = vmatprep.subr.mxu0 0.0
    %600 = vmatpush1.msra.mxu0 %v519
    %601 = vmatprep.subr.mxu0 0.0
    %602 = vmatpush1.msra.mxu0 %v520
    %603 = vmatprep.subr.mxu0 0.0
    %604 = vmatpush1.msra.mxu0 0.0
    %605 = vmatprep.subr.mxu0 0.0
    %606 = vmatpush1.msra.mxu0 0.0
    %607 = vmatprep.subr.mxu0 0.0
    %608 = vmatpush1.msra.mxu0 0.0
    %609 = vmatprep.subr.mxu0 0.0
    %610 = vmatpush1.msra.mxu0 0.0
    %611 = vmatprep.subr.mxu0 0.0
    %612 = vmatpush1.msra.mxu0 0.0
    %613 = vmatprep.subr.mxu0 0.0
    %614 = vmatpush1.msra.mxu0 0.0
    %615 = vmatprep.subr.mxu0 0.0
    %616 = vmatpush1.msra.mxu0 0.0
    %617 = vmatprep.subr.mxu0 0.0
    %618 = vmatpush1.msra.mxu0 0.0
    %619 = vmatprep.subr.mxu0 0.0
    %620 = vmatpush1.msra.mxu0 0.0
    %621 = vmatprep.subr.mxu0 0.0
    %622 = vmatpush1.msra.mxu0 0.0
    %623 = vmatprep.subr.mxu0 0.0
    %624 = vmatpush1.msra.mxu0 0.0
    %625 = vmatprep.subr.mxu0 0.0
    %626 = vmatpush1.msra.mxu0 0.0
    %627 = vmatprep.subr.mxu0 0.0
    %628 = vmatpush1.msra.mxu0 0.0
    %629 = vmatprep.subr.mxu0 0.0
    %630 = vmatpush1.msra.mxu0 0.0
    %631 = vmatprep.subr.mxu0 0.0
    %632 = vmatpush1.msra.mxu0 0.0
    %633 = vmatprep.subr.mxu0 0.0
    %634 = vmatpush1.msra.mxu0 0.0
    %635 = vmatprep.subr.mxu0 0.0
    %636 = vmatpush1.msra.mxu0 0.0
    %637 = vmatprep.subr.mxu0 0.0
    %638 = vmatpush1.msra.mxu0 0.0
    %639 = vmatprep.subr.mxu0 0.0
    %640 = vmatpush1.msra.mxu0 0.0
    %641 = vmatprep.subr.mxu0 0.0
    %642 = vmatpush1.msra.mxu0 0.0
    %643 = vmatprep.subr.mxu0 0.0
    %644 = vmatpush1.msra.mxu0 0.0
    %645 = vmatprep.subr.mxu0 0.0
    %646 = vmatpush1.msra.mxu0 0.0
    %647 = vmatprep.subr.mxu0 0.0
    %648 = vmatpush1.msra.mxu0 0.0
    %649 = vmatprep.subr.mxu0 0.0
    %650 = vmatpush1.msra.mxu0 0.0
    %651 = vmatprep.subr.mxu0 0.0
    %652 = vmatpush1.msra.mxu0 0.0
    %653 = vmatprep.subr.mxu0 0.0
    %654 = vmatpush1.msra.mxu0 0.0
    %655 = vmatprep.subr.mxu0 0.0
    %656 = vmatpush1.msra.mxu0 0.0
    %657 = vmatprep.subr.mxu0 0.0
    %658 = vmatpush1.msra.mxu0 0.0
    %659 = vmatprep.subr.mxu0 0.0
    %660 = vmatpush1.msra.mxu0 0.0
    %661 = vmatprep.subr.mxu0 0.0
    %662 = vmatpush1.msra.mxu0 0.0
    %663 = vmatprep.mubr.f32.mxu0 0.0
    %664 = vmatmul.mubr.f32.gmra.mrb[0].mxu0 %v597
    %v665 = vpop.f32.mrb[0].mxu0
    %v666 = vadd.f32 %v594, %v665
    %v667 = vpop.f32.mrb[0].mxu0
    %668 = vdwg.mxu0
    %v669 = vld [vmem:[#allocation5 + $0x80] sm:$0xff]
    %v670 = vld [vmem:[#allocation5 + $0x88] sm:$0xff]
    %v671 = vrot.slane %v517, 4
    %v672 = vsel %vm41, %v671, 0
    %674 = vmatprep.subr.mxu0 0.0
    %675 = vmatpush1.msra.mxu0 %v669
    %676 = vmatprep.subr.mxu0 0.0
    %677 = vmatpush1.msra.mxu0 %v670
    %678 = vmatprep.subr.mxu0 0.0
    %679 = vmatpush1.msra.mxu0 0.0
    %680 = vmatprep.subr.mxu0 0.0
    %681 = vmatpush1.msra.mxu0 0.0
    %682 = vmatprep.subr.mxu0 0.0
    %683 = vmatpush1.msra.mxu0 0.0
    %684 = vmatprep.subr.mxu0 0.0
    %685 = vmatpush1.msra.mxu0 0.0
    %686 = vmatprep.subr.mxu0 0.0
    %687 = vmatpush1.msra.mxu0 0.0
    %688 = vmatprep.subr.mxu0 0.0
    %689 = vmatpush1.msra.mxu0 0.0
    %690 = vmatprep.subr.mxu0 0.0
    %691 = vmatpush1.msra.mxu0 0.0
    %692 = vmatprep.subr.mxu0 0.0
    %693 = vmatpush1.msra.mxu0 0.0
    %694 = vmatprep.subr.mxu0 0.0
    %695 = vmatpush1.msra.mxu0 0.0
    %696 = vmatprep.subr.mxu0 0.0
    %697 = vmatpush1.msra.mxu0 0.0
    %698 = vmatprep.subr.mxu0 0.0
    %699 = vmatpush1.msra.mxu0 0.0
    %700 = vmatprep.subr.mxu0 0.0
    %701 = vmatpush1.msra.mxu0 0.0
    %702 = vmatprep.subr.mxu0 0.0
    %703 = vmatpush1.msra.mxu0 0.0
    %704 = vmatprep.subr.mxu0 0.0
    %705 = vmatpush1.msra.mxu0 0.0
    %706 = vmatprep.subr.mxu0 0.0
    %707 = vmatpush1.msra.mxu0 0.0
    %708 = vmatprep.subr.mxu0 0.0
    %709 = vmatpush1.msra.mxu0 0.0
    %710 = vmatprep.subr.mxu0 0.0
    %711 = vmatpush1.msra.mxu0 0.0
    %712 = vmatprep.subr.mxu0 0.0
    %713 = vmatpush1.msra.mxu0 0.0
    %714 = vmatprep.subr.mxu0 0.0
    %715 = vmatpush1.msra.mxu0 0.0
    %716 = vmatprep.subr.mxu0 0.0
    %717 = vmatpush1.msra.mxu0 0.0
    %718 = vmatprep.subr.mxu0 0.0
    %719 = vmatpush1.msra.mxu0 0.0
    %720 = vmatprep.subr.mxu0 0.0
    %721 = vmatpush1.msra.mxu0 0.0
    %722 = vmatprep.subr.mxu0 0.0
    %723 = vmatpush1.msra.mxu0 0.0
    %724 = vmatprep.subr.mxu0 0.0
    %725 = vmatpush1.msra.mxu0 0.0
    %726 = vmatprep.subr.mxu0 0.0
    %727 = vmatpush1.msra.mxu0 0.0
    %728 = vmatprep.subr.mxu0 0.0
    %729 = vmatpush1.msra.mxu0 0.0
    %730 = vmatprep.subr.mxu0 0.0
    %731 = vmatpush1.msra.mxu0 0.0
    %732 = vmatprep.subr.mxu0 0.0
    %733 = vmatpush1.msra.mxu0 0.0
    %734 = vmatprep.subr.mxu0 0.0
    %735 = vmatpush1.msra.mxu0 0.0
    %736 = vmatprep.subr.mxu0 0.0
    %737 = vmatpush1.msra.mxu0 0.0
    %738 = vmatprep.mubr.f32.mxu0 0.0
    %739 = vmatmul.mubr.f32.gmra.mrb[0].mxu0 %v672
    %v740 = vpop.f32.mrb[0].mxu0
    %v741 = vadd.f32 0.0, %v740
    %v742 = vpop.f32.mrb[0].mxu0
    %743 = vdwg.mxu0
    %v744 = vadd.f32 %v666, %v741
    %v745 = vld [vmem:[#allocation5 + $0x90] sm:$0xff]
    %v746 = vld [vmem:[#allocation5 + $0x98] sm:$0xff]
    %v747 = vrot.slane %v517, 6
    %v748 = vsel %vm41, %v747, 0
    %750 = vmatprep.subr.mxu0 0.0
    %751 = vmatpush1.msra.mxu0 %v745
    %752 = vmatprep.subr.mxu0 0.0
    %753 = vmatpush1.msra.mxu0 %v746
    %754 = vmatprep.subr.mxu0 0.0
    %755 = vmatpush1.msra.mxu0 0.0
    %756 = vmatprep.subr.mxu0 0.0
    %757 = vmatpush1.msra.mxu0 0.0
    %758 = vmatprep.subr.mxu0 0.0
    %759 = vmatpush1.msra.mxu0 0.0
    %760 = vmatprep.subr.mxu0 0.0
    %761 = vmatpush1.msra.mxu0 0.0
    %762 = vmatprep.subr.mxu0 0.0
    %763 = vmatpush1.msra.mxu0 0.0
    %764 = vmatprep.subr.mxu0 0.0
    %765 = vmatpush1.msra.mxu0 0.0
    %766 = vmatprep.subr.mxu0 0.0
    %767 = vmatpush1.msra.mxu0 0.0
    %768 = vmatprep.subr.mxu0 0.0
    %769 = vmatpush1.msra.mxu0 0.0
    %770 = vmatprep.subr.mxu0 0.0
    %771 = vmatpush1.msra.mxu0 0.0
    %772 = vmatprep.subr.mxu0 0.0
    %773 = vmatpush1.msra.mxu0 0.0
    %774 = vmatprep.subr.mxu0 0.0
    %775 = vmatpush1.msra.mxu0 0.0
    %776 = vmatprep.subr.mxu0 0.0
    %777 = vmatpush1.msra.mxu0 0.0
    %778 = vmatprep.subr.mxu0 0.0
    %779 = vmatpush1.msra.mxu0 0.0
    %780 = vmatprep.subr.mxu0 0.0
    %781 = vmatpush1.msra.mxu0 0.0
    %782 = vmatprep.subr.mxu0 0.0
    %783 = vmatpush1.msra.mxu0 0.0
    %784 = vmatprep.subr.mxu0 0.0
    %785 = vmatpush1.msra.mxu0 0.0
    %786 = vmatprep.subr.mxu0 0.0
    %787 = vmatpush1.msra.mxu0 0.0
    %788 = vmatprep.subr.mxu0 0.0
    %789 = vmatpush1.msra.mxu0 0.0
    %790 = vmatprep.subr.mxu0 0.0
    %791 = vmatpush1.msra.mxu0 0.0
    %792 = vmatprep.subr.mxu0 0.0
    %793 = vmatpush1.msra.mxu0 0.0
    %794 = vmatprep.subr.mxu0 0.0
    %795 = vmatpush1.msra.mxu0 0.0
    %796 = vmatprep.subr.mxu0 0.0
    %797 = vmatpush1.msra.mxu0 0.0
    %798 = vmatprep.subr.mxu0 0.0
    %799 = vmatpush1.msra.mxu0 0.0
    %800 = vmatprep.subr.mxu0 0.0
    %801 = vmatpush1.msra.mxu0 0.0
    %802 = vmatprep.subr.mxu0 0.0
    %803 = vmatpush1.msra.mxu0 0.0
    %804 = vmatprep.subr.mxu0 0.0
    %805 = vmatpush1.msra.mxu0 0.0
    %806 = vmatprep.subr.mxu0 0.0
    %807 = vmatpush1.msra.mxu0 0.0
    %808 = vmatprep.subr.mxu0 0.0
    %809 = vmatpush1.msra.mxu0 0.0
    %810 = vmatprep.subr.mxu0 0.0
    %811 = vmatpush1.msra.mxu0 0.0
    %812 = vmatprep.subr.mxu0 0.0
    %813 = vmatpush1.msra.mxu0 0.0
    %814 = vmatprep.mubr.f32.mxu0 0.0
    %815 = vmatmul.mubr.f32.gmra.mrb[0].mxu0 %v748
    %v816 = vpop.f32.mrb[0].mxu0
    %v817 = vadd.f32 0.0, %v816
    %v818 = vpop.f32.mrb[0].mxu0
    %819 = vdwg.mxu0
    %v820 = vadd.f32 %v744, %v817
    %v821 = vld [vmem:[#allocation5 + $0xa0] sm:$0xff]
    %v822 = vld [vmem:[#allocation5 + $0xa8] sm:$0xff]
    %v824 = vsel %vm41, %v518, 0
    %826 = vmatprep.subr.mxu0 0.0
    %827 = vmatpush1.msra.mxu0 %v821
    %828 = vmatprep.subr.mxu0 0.0
    %829 = vmatpush1.msra.mxu0 %v822
    %830 = vmatprep.subr.mxu0 0.0
    %831 = vmatpush1.msra.mxu0 0.0
    %832 = vmatprep.subr.mxu0 0.0
    %833 = vmatpush1.msra.mxu0 0.0
    %834 = vmatprep.subr.mxu0 0.0
    %835 = vmatpush1.msra.mxu0 0.0
    %836 = vmatprep.subr.mxu0 0.0
    %837 = vmatpush1.msra.mxu0 0.0
    %838 = vmatprep.subr.mxu0 0.0
    %839 = vmatpush1.msra.mxu0 0.0
    %840 = vmatprep.subr.mxu0 0.0
    %841 = vmatpush1.msra.mxu0 0.0
    %842 = vmatprep.subr.mxu0 0.0
    %843 = vmatpush1.msra.mxu0 0.0
    %844 = vmatprep.subr.mxu0 0.0
    %845 = vmatpush1.msra.mxu0 0.0
    %846 = vmatprep.subr.mxu0 0.0
    %847 = vmatpush1.msra.mxu0 0.0
    %848 = vmatprep.subr.mxu0 0.0
    %849 = vmatpush1.msra.mxu0 0.0
    %850 = vmatprep.subr.mxu0 0.0
    %851 = vmatpush1.msra.mxu0 0.0
    %852 = vmatprep.subr.mxu0 0.0
    %853 = vmatpush1.msra.mxu0 0.0
    %854 = vmatprep.subr.mxu0 0.0
    %855 = vmatpush1.msra.mxu0 0.0
    %856 = vmatprep.subr.mxu0 0.0
    %857 = vmatpush1.msra.mxu0 0.0
    %858 = vmatprep.subr.mxu0 0.0
    %859 = vmatpush1.msra.mxu0 0.0
    %860 = vmatprep.subr.mxu0 0.0
    %861 = vmatpush1.msra.mxu0 0.0
    %862 = vmatprep.subr.mxu0 0.0
    %863 = vmatpush1.msra.mxu0 0.0
    %864 = vmatprep.subr.mxu0 0.0
    %865 = vmatpush1.msra.mxu0 0.0
    %866 = vmatprep.subr.mxu0 0.0
    %867 = vmatpush1.msra.mxu0 0.0
    %868 = vmatprep.subr.mxu0 0.0
    %869 = vmatpush1.msra.mxu0 0.0
    %870 = vmatprep.subr.mxu0 0.0
    %871 = vmatpush1.msra.mxu0 0.0
    %872 = vmatprep.subr.mxu0 0.0
    %873 = vmatpush1.msra.mxu0 0.0
    %874 = vmatprep.subr.mxu0 0.0
    %875 = vmatpush1.msra.mxu0 0.0
    %876 = vmatprep.subr.mxu0 0.0
    %877 = vmatpush1.msra.mxu0 0.0
    %878 = vmatprep.subr.mxu0 0.0
    %879 = vmatpush1.msra.mxu0 0.0
    %880 = vmatprep.subr.mxu0 0.0
    %881 = vmatpush1.msra.mxu0 0.0
    %882 = vmatprep.subr.mxu0 0.0
    %883 = vmatpush1.msra.mxu0 0.0
    %884 = vmatprep.subr.mxu0 0.0
    %885 = vmatpush1.msra.mxu0 0.0
    %886 = vmatprep.subr.mxu0 0.0
    %887 = vmatpush1.msra.mxu0 0.0
    %888 = vmatprep.subr.mxu0 0.0
    %889 = vmatpush1.msra.mxu0 0.0
    %890 = vmatprep.mubr.f32.mxu0 0.0
    %891 = vmatmul.mubr.f32.gmra.mrb[0].mxu0 %v824
    %v892 = vpop.f32.mrb[0].mxu0
    %v893 = vadd.f32 0.0, %v892
    %v894 = vpop.f32.mrb[0].mxu0
    %895 = vdwg.mxu0
    %v896 = vadd.f32 %v820, %v893
    %v897 = vld [vmem:[#allocation5 + $0xb0] sm:$0xff]
    %v898 = vld [vmem:[#allocation5 + $0xb8] sm:$0xff]
    %v899 = vrot.slane %v518, 2
    %v900 = vsel %vm41, %v899, 0
    %902 = vmatprep.subr.mxu0 0.0
    %903 = vmatpush1.msra.mxu0 %v897
    %904 = vmatprep.subr.mxu0 0.0
    %905 = vmatpush1.msra.mxu0 %v898
    %906 = vmatprep.subr.mxu0 0.0
    %907 = vmatpush1.msra.mxu0 0.0
    %908 = vmatprep.subr.mxu0 0.0
    %909 = vmatpush1.msra.mxu0 0.0
    %910 = vmatprep.subr.mxu0 0.0
    %911 = vmatpush1.msra.mxu0 0.0
    %912 = vmatprep.subr.mxu0 0.0
    %913 = vmatpush1.msra.mxu0 0.0
    %914 = vmatprep.subr.mxu0 0.0
    %915 = vmatpush1.msra.mxu0 0.0
    %916 = vmatprep.subr.mxu0 0.0
    %917 = vmatpush1.msra.mxu0 0.0
    %918 = vmatprep.subr.mxu0 0.0
    %919 = vmatpush1.msra.mxu0 0.0
    %920 = vmatprep.subr.mxu0 0.0
    %921 = vmatpush1.msra.mxu0 0.0
    %922 = vmatprep.subr.mxu0 0.0
    %923 = vmatpush1.msra.mxu0 0.0
    %924 = vmatprep.subr.mxu0 0.0
    %925 = vmatpush1.msra.mxu0 0.0
    %926 = vmatprep.subr.mxu0 0.0
    %927 = vmatpush1.msra.mxu0 0.0
    %928 = vmatprep.subr.mxu0 0.0
    %929 = vmatpush1.msra.mxu0 0.0
    %930 = vmatprep.subr.mxu0 0.0
    %931 = vmatpush1.msra.mxu0 0.0
    %932 = vmatprep.subr.mxu0 0.0
    %933 = vmatpush1.msra.mxu0 0.0
    %934 = vmatprep.subr.mxu0 0.0
    %935 = vmatpush1.msra.mxu0 0.0
    %936 = vmatprep.subr.mxu0 0.0
    %937 = vmatpush1.msra.mxu0 0.0
    %938 = vmatprep.subr.mxu0 0.0
    %939 = vmatpush1.msra.mxu0 0.0
    %940 = vmatprep.subr.mxu0 0.0
    %941 = vmatpush1.msra.mxu0 0.0
    %942 = vmatprep.subr.mxu0 0.0
    %943 = vmatpush1.msra.mxu0 0.0
    %944 = vmatprep.subr.mxu0 0.0
    %945 = vmatpush1.msra.mxu0 0.0
    %946 = vmatprep.subr.mxu0 0.0
    %947 = vmatpush1.msra.mxu0 0.0
    %948 = vmatprep.subr.mxu0 0.0
    %949 = vmatpush1.msra.mxu0 0.0
    %950 = vmatprep.subr.mxu0 0.0
    %951 = vmatpush1.msra.mxu0 0.0
    %952 = vmatprep.subr.mxu0 0.0
    %953 = vmatpush1.msra.mxu0 0.0
    %954 = vmatprep.subr.mxu0 0.0
    %955 = vmatpush1.msra.mxu0 0.0
    %956 = vmatprep.subr.mxu0 0.0
    %957 = vmatpush1.msra.mxu0 0.0
    %958 = vmatprep.subr.mxu0 0.0
    %959 = vmatpush1.msra.mxu0 0.0
    %960 = vmatprep.subr.mxu0 0.0
    %961 = vmatpush1.msra.mxu0 0.0
    %962 = vmatprep.subr.mxu0 0.0
    %963 = vmatpush1.msra.mxu0 0.0
    %964 = vmatprep.subr.mxu0 0.0
    %965 = vmatpush1.msra.mxu0 0.0
    %966 = vmatprep.mubr.f32.mxu0 0.0
    %967 = vmatmul.mubr.f32.gmra.mrb[0].mxu0 %v900
    %v968 = vpop.f32.mrb[0].mxu0
    %v969 = vadd.f32 0.0, %v968
    %v970 = vpop.f32.mrb[0].mxu0
    %971 = vdwg.mxu0
    %v972 = vadd.f32 %v896, %v969
    %v973 = vld [vmem:[#allocation5 + $0xc0] sm:$0xff]
    %v974 = vld [vmem:[#allocation5 + $0xc8] sm:$0xff]
    %v975 = vrot.slane %v518, 4
    %v976 = vsel %vm41, %v975, 0
    %978 = vmatprep.subr.mxu0 0.0
    %979 = vmatpush1.msra.mxu0 %v973
    %980 = vmatprep.subr.mxu0 0.0
    %981 = vmatpush1.msra.mxu0 %v974
    %982 = vmatprep.subr.mxu0 0.0
    %983 = vmatpush1.msra.mxu0 0.0
    %984 = vmatprep.subr.mxu0 0.0
    %985 = vmatpush1.msra.mxu0 0.0
    %986 = vmatprep.subr.mxu0 0.0
    %987 = vmatpush1.msra.mxu0 0.0
    %988 = vmatprep.subr.mxu0 0.0
    %989 = vmatpush1.msra.mxu0 0.0
    %990 = vmatprep.subr.mxu0 0.0
    %991 = vmatpush1.msra.mxu0 0.0
    %992 = vmatprep.subr.mxu0 0.0
    %993 = vmatpush1.msra.mxu0 0.0
    %994 = vmatprep.subr.mxu0 0.0
    %995 = vmatpush1.msra.mxu0 0.0
    %996 = vmatprep.subr.mxu0 0.0
    %997 = vmatpush1.msra.mxu0 0.0
    %998 = vmatprep.subr.mxu0 0.0
    %999 = vmatpush1.msra.mxu0 0.0
    %1000 = vmatprep.subr.mxu0 0.0
    %1001 = vmatpush1.msra.mxu0 0.0
    %1002 = vmatprep.subr.mxu0 0.0
    %1003 = vmatpush1.msra.mxu0 0.0
    %1004 = vmatprep.subr.mxu0 0.0
    %1005 = vmatpush1.msra.mxu0 0.0
    %1006 = vmatprep.subr.mxu0 0.0
    %1007 = vmatpush1.msra.mxu0 0.0
    %1008 = vmatprep.subr.mxu0 0.0
    %1009 = vmatpush1.msra.mxu0 0.0
    %1010 = vmatprep.subr.mxu0 0.0
    %1011 = vmatpush1.msra.mxu0 0.0
    %1012 = vmatprep.subr.mxu0 0.0
    %1013 = vmatpush1.msra.mxu0 0.0
    %1014 = vmatprep.subr.mxu0 0.0
    %1015 = vmatpush1.msra.mxu0 0.0
    %1016 = vmatprep.subr.mxu0 0.0
    %1017 = vmatpush1.msra.mxu0 0.0
    %1018 = vmatprep.subr.mxu0 0.0
    %1019 = vmatpush1.msra.mxu0 0.0
    %1020 = vmatprep.subr.mxu0 0.0
    %1021 = vmatpush1.msra.mxu0 0.0
    %1022 = vmatprep.subr.mxu0 0.0
    %1023 = vmatpush1.msra.mxu0 0.0
    %1024 = vmatprep.subr.mxu0 0.0
    %1025 = vmatpush1.msra.mxu0 0.0
    %1026 = vmatprep.subr.mxu0 0.0
    %1027 = vmatpush1.msra.mxu0 0.0
    %1028 = vmatprep.subr.mxu0 0.0
    %1029 = vmatpush1.msra.mxu0 0.0
    %1030 = vmatprep.subr.mxu0 0.0
    %1031 = vmatpush1.msra.mxu0 0.0
    %1032 = vmatprep.subr.mxu0 0.0
    %1033 = vmatpush1.msra.mxu0 0.0
    %1034 = vmatprep.subr.mxu0 0.0
    %1035 = vmatpush1.msra.mxu0 0.0
    %1036 = vmatprep.subr.mxu0 0.0
    %1037 = vmatpush1.msra.mxu0 0.0
    %1038 = vmatprep.subr.mxu0 0.0
    %1039 = vmatpush1.msra.mxu0 0.0
    %1040 = vmatprep.subr.mxu0 0.0
    %1041 = vmatpush1.msra.mxu0 0.0
    %1042 = vmatprep.mubr.f32.mxu0 0.0
    %1043 = vmatmul.mubr.f32.gmra.mrb[0].mxu0 %v976
    %v1044 = vpop.f32.mrb[0].mxu0
    %v1045 = vadd.f32 0.0, %v1044
    %v1046 = vpop.f32.mrb[0].mxu0
    %1047 = vdwg.mxu0
    %v1048 = vadd.f32 %v972, %v1045
    %v1049 = vld [vmem:[#allocation5 + $0xd0] sm:$0xff]
    %v1050 = vld [vmem:[#allocation5 + $0xd8] sm:$0xff]
    %v1051 = vrot.slane %v518, 6
    %v1052 = vsel %vm41, %v1051, 0
    %1054 = vmatprep.subr.mxu0 0.0
    %1055 = vmatpush1.msra.mxu0 %v1049
    %1056 = vmatprep.subr.mxu0 0.0
    %1057 = vmatpush1.msra.mxu0 %v1050
    %1058 = vmatprep.subr.mxu0 0.0
    %1059 = vmatpush1.msra.mxu0 0.0
    %1060 = vmatprep.subr.mxu0 0.0
    %1061 = vmatpush1.msra.mxu0 0.0
    %1062 = vmatprep.subr.mxu0 0.0
    %1063 = vmatpush1.msra.mxu0 0.0
    %1064 = vmatprep.subr.mxu0 0.0
    %1065 = vmatpush1.msra.mxu0 0.0
    %1066 = vmatprep.subr.mxu0 0.0
    %1067 = vmatpush1.msra.mxu0 0.0
    %1068 = vmatprep.subr.mxu0 0.0
    %1069 = vmatpush1.msra.mxu0 0.0
    %1070 = vmatprep.subr.mxu0 0.0
    %1071 = vmatpush1.msra.mxu0 0.0
    %1072 = vmatprep.subr.mxu0 0.0
    %1073 = vmatpush1.msra.mxu0 0.0
    %1074 = vmatprep.subr.mxu0 0.0
    %1075 = vmatpush1.msra.mxu0 0.0
    %1076 = vmatprep.subr.mxu0 0.0
    %1077 = vmatpush1.msra.mxu0 0.0
    %1078 = vmatprep.subr.mxu0 0.0
    %1079 = vmatpush1.msra.mxu0 0.0
    %1080 = vmatprep.subr.mxu0 0.0
    %1081 = vmatpush1.msra.mxu0 0.0
    %1082 = vmatprep.subr.mxu0 0.0
    %1083 = vmatpush1.msra.mxu0 0.0
    %1084 = vmatprep.subr.mxu0 0.0
    %1085 = vmatpush1.msra.mxu0 0.0
    %1086 = vmatprep.subr.mxu0 0.0
    %1087 = vmatpush1.msra.mxu0 0.0
    %1088 = vmatprep.subr.mxu0 0.0
    %1089 = vmatpush1.msra.mxu0 0.0
    %1090 = vmatprep.subr.mxu0 0.0
    %1091 = vmatpush1.msra.mxu0 0.0
    %1092 = vmatprep.subr.mxu0 0.0
    %1093 = vmatpush1.msra.mxu0 0.0
    %1094 = vmatprep.subr.mxu0 0.0
    %1095 = vmatpush1.msra.mxu0 0.0
    %1096 = vmatprep.subr.mxu0 0.0
    %1097 = vmatpush1.msra.mxu0 0.0
    %1098 = vmatprep.subr.mxu0 0.0
    %1099 = vmatpush1.msra.mxu0 0.0
    %1100 = vmatprep.subr.mxu0 0.0
    %1101 = vmatpush1.msra.mxu0 0.0
    %1102 = vmatprep.subr.mxu0 0.0
    %1103 = vmatpush1.msra.mxu0 0.0
    %1104 = vmatprep.subr.mxu0 0.0
    %1105 = vmatpush1.msra.mxu0 0.0
    %1106 = vmatprep.subr.mxu0 0.0
    %1107 = vmatpush1.msra.mxu0 0.0
    %1108 = vmatprep.subr.mxu0 0.0
    %1109 = vmatpush1.msra.mxu0 0.0
    %1110 = vmatprep.subr.mxu0 0.0
    %1111 = vmatpush1.msra.mxu0 0.0
    %1112 = vmatprep.subr.mxu0 0.0
    %1113 = vmatpush1.msra.mxu0 0.0
    %1114 = vmatprep.subr.mxu0 0.0
    %1115 = vmatpush1.msra.mxu0 0.0
    %1116 = vmatprep.subr.mxu0 0.0
    %1117 = vmatpush1.msra.mxu0 0.0
    %1118 = vmatprep.mubr.f32.mxu0 0.0
    %1119 = vmatmul.mubr.f32.gmra.mrb[0].mxu0 %v1052
    %v1120 = vpop.f32.mrb[0].mxu0
    %v1121 = vadd.f32 0.0, %v1120
    %v1122 = vpop.f32.mrb[0].mxu0
    %1123 = vdwg.mxu0
    %v1124 = vadd.f32 %v1048, %v1121
    %v1125 = vld [vmem:[#allocation5 + $0xe0] sm:$0x1]
    %v1126 = vlaneseq
    %v1127 = vshrl.u32 %v1126, 7
    %v1128 = vsub.s32 0, %v1127
    %v1129 = vrot.slane %v1125, %v1128
    %v1130 = vadd.f32 %v1124, %v1129
    %v1131 = vld [vmem:[#allocation5 + $0xe8] sm:$0xff]
    %v1132 = vld [vmem:[#allocation5 + $0xf0] sm:$0xff]
    %v1133 = vld [vmem:[#allocation5 + $0xf8] sm:$0xff]
    %v1134 = vld [vmem:[#allocation5 + $0x100] sm:$0xff]
    %v1135 = vld [vmem:[#allocation5 + $0x108] sm:$0x1]
    %v1136 = vmax.f32 %v1130, 0.0
    %v1137 = vlaneseq
    %v1138 = vshrl.u32 %v1137, 7
    %v1139 = vsub.s32 0, %v1138
    %v1140 = vrot.slane %v1135, %v1139
    %vm1141 = vcmask 261120
    %v1143 = vsel %vm1141, %v1136, 0
    %1145 = vmatprep.subr.mxu0 0.0
    %1146 = vmatpush1.msra.mxu0 %v1131
    %1147 = vmatprep.subr.mxu0 0.0
    %1148 = vmatpush1.msra.mxu0 %v1132
    %1149 = vmatprep.subr.mxu0 0.0
    %1150 = vmatpush1.msra.mxu0 %v1133
    %1151 = vmatprep.subr.mxu0 0.0
    %1152 = vmatpush1.msra.mxu0 %v1134
    %1153 = vmatprep.subr.mxu0 0.0
    %1154 = vmatpush1.msra.mxu0 0.0
    %1155 = vmatprep.subr.mxu0 0.0
    %1156 = vmatpush1.msra.mxu0 0.0
    %1157 = vmatprep.subr.mxu0 0.0
    %1158 = vmatpush1.msra.mxu0 0.0
    %1159 = vmatprep.subr.mxu0 0.0
    %1160 = vmatpush1.msra.mxu0 0.0
    %1161 = vmatprep.subr.mxu0 0.0
    %1162 = vmatpush1.msra.mxu0 0.0
    %1163 = vmatprep.subr.mxu0 0.0
    %1164 = vmatpush1.msra.mxu0 0.0
    %1165 = vmatprep.subr.mxu0 0.0
    %1166 = vmatpush1.msra.mxu0 0.0
    %1167 = vmatprep.subr.mxu0 0.0
    %1168 = vmatpush1.msra.mxu0 0.0
    %1169 = vmatprep.subr.mxu0 0.0
    %1170 = vmatpush1.msra.mxu0 0.0
    %1171 = vmatprep.subr.mxu0 0.0
    %1172 = vmatpush1.msra.mxu0 0.0
    %1173 = vmatprep.subr.mxu0 0.0
    %1174 = vmatpush1.msra.mxu0 0.0
    %1175 = vmatprep.subr.mxu0 0.0
    %1176 = vmatpush1.msra.mxu0 0.0
    %1177 = vmatprep.subr.mxu0 0.0
    %1178 = vmatpush1.msra.mxu0 0.0
    %1179 = vmatprep.subr.mxu0 0.0
    %1180 = vmatpush1.msra.mxu0 0.0
    %1181 = vmatprep.subr.mxu0 0.0
    %1182 = vmatpush1.msra.mxu0 0.0
    %1183 = vmatprep.subr.mxu0 0.0
    %1184 = vmatpush1.msra.mxu0 0.0
    %1185 = vmatprep.subr.mxu0 0.0
    %1186 = vmatpush1.msra.mxu0 0.0
    %1187 = vmatprep.subr.mxu0 0.0
    %1188 = vmatpush1.msra.mxu0 0.0
    %1189 = vmatprep.subr.mxu0 0.0
    %1190 = vmatpush1.msra.mxu0 0.0
    %1191 = vmatprep.subr.mxu0 0.0
    %1192 = vmatpush1.msra.mxu0 0.0
    %1193 = vmatprep.subr.mxu0 0.0
    %1194 = vmatpush1.msra.mxu0 0.0
    %1195 = vmatprep.subr.mxu0 0.0
    %1196 = vmatpush1.msra.mxu0 0.0
    %1197 = vmatprep.subr.mxu0 0.0
    %1198 = vmatpush1.msra.mxu0 0.0
    %1199 = vmatprep.subr.mxu0 0.0
    %1200 = vmatpush1.msra.mxu0 0.0
    %1201 = vmatprep.subr.mxu0 0.0
    %1202 = vmatpush1.msra.mxu0 0.0
    %1203 = vmatprep.subr.mxu0 0.0
    %1204 = vmatpush1.msra.mxu0 0.0
    %1205 = vmatprep.subr.mxu0 0.0
    %1206 = vmatpush1.msra.mxu0 0.0
    %1207 = vmatprep.subr.mxu0 0.0
    %1208 = vmatpush1.msra.mxu0 0.0
    %1209 = vmatprep.mubr.f32.mxu0 0.0
    %1210 = vmatmul.mubr.f32.gmra.mrb[0].mxu0 %v1143
    %v1211 = vpop.f32.mrb[0].mxu0
    %v1212 = vadd.f32 %v1140, %v1211
    %v1213 = vpop.f32.mrb[0].mxu0
    %1214 = vdwg.mxu0
    %vm1215 = vcmask 123904
    %1216 = vst.msk [vmem:[#allocation7] sm:$0x3] %vm1215, %v1212
    // Predicated region
    $region18: #{tpu_custom_call.1} parent=1 // pred_check
      _
    $region19: #{tpu_custom_call.1} parent=1 // pred_check_branch
      %1218 = sbr.rel (0) target = $region21
    $region20: #{tpu_custom_call.1} parent=1 // pred_region
      %s1220 = ssub.s32 32, 32
      %1221 = vsyncadd [#allocation4], %s1220
      %s1223 = sshll.u32 [#allocation7], 4
      %s1224 = int_to_ptr.vmem [resolvable:$true] %s1223
      %1226 = dma.vmem_to_hbm [thread:$0]  %s1224, 32, %s2, [#allocation4]
    $region21: #{tpu_custom_call.1} parent=1 // pred_fallthru
      _
    // Predicated region
    $region22: #{tpu_custom_call.1} parent=1 // pred_check
      _
    $region23: #{tpu_custom_call.1} parent=1 // pred_check_branch
      %1228 = sbr.rel (0) target = $region25
    $region24: #{tpu_custom_call.1} parent=1 // pred_region
      %1229 = dma.done [#allocation4], 32
    $region25: #{tpu_custom_call.1} parent=1 // pred_fallthru
      _
    %1230 = vsyncpa [#allocation3], 1
    %1231 = vsyncpa [#allocation6], 1
    %1232 = vsyncpa [#allocation4], 1

</llo_original>
